<compile_context>
chip_gen: v7x
topology: tpu7x:2x2x1
jax: 0.10.0
libtpu: 0.0.40
codegen_flags: <defaults>
</compile_context>

<pallas_src>
import math

import jax
import jax.numpy as jnp
from jax import lax
from jax.experimental import pallas as pl
from jax.experimental.pallas import tpu as pltpu


def _round_up(x, m):
    return (x + m - 1) // m * m


def _cdiv(a, b):
    return (a + b - 1) // b


def _vmem_limit_bytes():
    """Generation-aware scoped-VMEM limit (v7x: 64 MiB per TC, v5e/v6e: 128 MiB)."""
    cap = None
    try:
        cap = getattr(pltpu.get_tpu_info(), "vmem_capacity_bytes", None)
    except Exception:
        cap = None
    if not cap:
        cap = 64 * 1024 * 1024  # conservative fallback == v7x per-TC capacity
    return int(min(cap * 3 // 4, 100 * 1024 * 1024))


# ----------------------------------------------------------------------------- kernels
def _project_scale_kernel(feat_ref, w_ref, nsrc_ref, h_ref):
    """H = (X @ W) * norm_src for one tile of src rows (matmul-first prologue).

    Stored as bf16 so the hot aggregation loop streams half the bytes and hits the
    bf16 MXU path.
    """
    # TODO(synk): K-tile F_in here (instead of full-row block + resident W) if F_in_p
    #             ever gets large enough to pressure v7x's 64 MiB VMEM.
    h = jnp.dot(feat_ref[...], w_ref[...], preferred_element_type=jnp.float32)
    h_ref[...] = (h * nsrc_ref[...]).astype(h_ref.dtype)


def _aggregate_kernel(adj_ref, h_ref, out_ref, acc_ref, deg_ref):
    """out[i] = rsqrt(clamp(in_deg,1)) * sum_k adj[i, k] @ H[k]   (matmul-first)."""
    k = pl.program_id(1)

    @pl.when(k == 0)
    def _init():
        acc_ref[...] = jnp.zeros_like(acc_ref)
        deg_ref[...] = jnp.zeros_like(deg_ref)

    adj = adj_ref[...]  # bf16 stays bf16 -> bf16xbf16 MXU dot, f32 accumulation
    acc_ref[...] += jnp.dot(adj, h_ref[...], preferred_element_type=jnp.float32)
    # In-degree accumulated for free alongside the matmul (f32 accumulation so
    # high-degree nodes stay exact).
    deg_ref[...] += jnp.sum(adj.astype(jnp.float32), axis=1, keepdims=True)

    @pl.when(k == pl.num_programs(1) - 1)
    def _finalize():
        norm_dst = lax.rsqrt(jnp.maximum(deg_ref[...], 1.0))
        # TODO(synk): hook an elementwise activation here if one is supplied
        #             (self._activation is None in the reference config).
        out_ref[...] = (acc_ref[...] * norm_dst).astype(out_ref.dtype)


def _aggregate_project_kernel(adj_ref, feat_ref, w_ref, out_ref, acc_ref, deg_ref):
    """out[i] = rsqrt(clamp(in_deg,1)) * ((sum_k adj[i, k] @ X[k]) @ W)  (aggregate-first)."""
    k = pl.program_id(1)

    @pl.when(k == 0)
    def _init():
        acc_ref[...] = jnp.zeros_like(acc_ref)
        deg_ref[...] = jnp.zeros_like(deg_ref)

    adj = adj_ref[...]  # bf16
    acc_ref[...] += jnp.dot(adj, feat_ref[...], preferred_element_type=jnp.float32)
    deg_ref[...] += jnp.sum(adj.astype(jnp.float32), axis=1, keepdims=True)

    @pl.when(k == pl.num_programs(1) - 1)
    def _finalize():
        norm_dst = lax.rsqrt(jnp.maximum(deg_ref[...], 1.0))
        proj = jnp.dot(acc_ref[...], w_ref[...], preferred_element_type=jnp.float32)
        # TODO(synk): hook an elementwise activation here if one is supplied.
        out_ref[...] = (proj * norm_dst).astype(out_ref.dtype)


# ----------------------------------------------------------------------------- wrapper
def graph_conv(adj, feat, weight, *, tm=512, tk=2048):
    """GraphConv forward.

    adj:    (N, N) dense dst-by-src 0/1 adjacency (adj[d, s] = 1.0 iff edge s -> d)
    feat:   (N, F_in) node features
    weight: (F_in, F_out)
    Returns (N, F_out).
    """
    N_dst, N_src = adj.shape
    assert feat.shape[0] == N_src
    F_in = feat.shape[1]
    F_out = weight.shape[1]
    matmul_first = F_in > F_out
    out_dtype = feat.dtype
    vmem_limit = _vmem_limit_bytes()

    # Tile sizes: dst rows multiple of 8, src/K columns multiple of 128.
    TM = min(tm, _round_up(N_dst, 8))
    # Keep >= 2 dst tiles when possible so v7x megacore can shard the parallel axis.
    if TM >= _round_up(N_dst, 8) and N_dst > 8:
        TM = _round_up(_cdiv(N_dst, 2), 8)
    TK = min(tk, _round_up(N_src, 128))
    N_dst_p = _round_up(N_dst, TM)
    N_src_p = _round_up(N_src, TK)
    F_in_p = _round_up(F_in, 128)        # lane-dense feature / weight dims
    F_out_p = _round_up(F_out, 128)

    # Single fused cast+pad pass over the f32 adjacency: 0/1 -> bf16 is exact.
    # TODO(synk): fold this cast+pad and the out-degree column sum into one Pallas
    #             prologue pass to shave the remaining extra adjacency read.
    adj_p = jnp.pad(adj.astype(jnp.bfloat16),
                    ((0, N_dst_p - N_dst), (0, N_src_p - N_src)))
    w_p = jnp.pad(weight.astype(jnp.float32),
                  ((0, F_in_p - F_in), (0, F_out_p - F_out)))

    agg_compiler_params = pltpu.CompilerParams(
        dimension_semantics=("parallel", "arbitrary"),   # dst tiles parallel, K reduction
        vmem_limit_bytes=vmem_limit,
    )

    if matmul_first:
        # out-degrees (column sums) only needed in this branch; f32 accumulation over
        # the bf16 adjacency (exact for 0/1).
        out_degs = jnp.sum(adj_p, axis=0, dtype=jnp.float32)
        nsrc_p = lax.rsqrt(jnp.maximum(out_degs, 1.0)).reshape(N_src_p, 1)

        feat_p = jnp.pad(feat.astype(jnp.float32),
                         ((0, N_src_p - N_src), (0, F_in_p - F_in)))

        # --- prologue: H = (X @ W) * norm_src, computed once, stored bf16 ---
        TMP = 512 if N_src_p % 512 == 0 else (256 if N_src_p % 256 == 0 else 128)
        h = pl.pallas_call(
            _project_scale_kernel,
            out_shape=jax.ShapeDtypeStruct((N_src_p, F_out_p), jnp.bfloat16),
            grid_spec=pl.GridSpec(
                grid=(N_src_p // TMP,),
                in_specs=[
                    pl.BlockSpec((TMP, F_in_p), lambda i: (i, 0)),
                    pl.BlockSpec((F_in_p, F_out_p), lambda i: (0, 0)),
                    pl.BlockSpec((TMP, 1), lambda i: (i, 0)),
                ],
                out_specs=pl.BlockSpec((TMP, F_out_p), lambda i: (i, 0)),
            ),
            compiler_params=pltpu.CompilerParams(
                dimension_semantics=("parallel",),
                vmem_limit_bytes=vmem_limit,
            ),
        )(feat_p, w_p, nsrc_p)

        # --- hot loop: out = norm_dst * (A @ H), tiled over (dst, K), all-bf16 streams ---
        # TODO(synk): if xprof shows exposed adj DMA, add pipeline_mode=pl.Buffered(3)
        #             on the adjacency BlockSpec (watch the v7x VMEM budget).
        out_p = pl.pallas_call(
            _aggregate_kernel,
            out_shape=jax.ShapeDtypeStruct((N_dst_p, F_out_p), out_dtype),
            grid_spec=pltpu.PrefetchScalarGridSpec(
                num_scalar_prefetch=0,
                grid=(N_dst_p // TM, N_src_p // TK),
                in_specs=[
                    pl.BlockSpec((TM, TK), lambda i, k: (i, k)),        # adjacency tile (bf16)
                    pl.BlockSpec((TK, F_out_p), lambda i, k: (k, 0)),   # projected feats (bf16)
                ],
                out_specs=pl.BlockSpec((TM, F_out_p), lambda i, k: (i, 0)),
                scratch_shapes=[
                    pltpu.VMEM((TM, F_out_p), jnp.float32),   # matmul accumulator
                    pltpu.VMEM((TM, 1), jnp.float32),         # in-degree accumulator
                ],
            ),
            compiler_params=agg_compiler_params,
        )(adj_p, h)
    else:
        # --- fused: accumulate A @ X (bf16 streams) over K, project with resident f32 W ---
        feat_p = jnp.pad(feat.astype(jnp.bfloat16),
                         ((0, N_src_p - N_src), (0, F_in_p - F_in)))
        out_p = pl.pallas_call(
            _aggregate_project_kernel,
            out_shape=jax.ShapeDtypeStruct((N_dst_p, F_out_p), out_dtype),
            grid_spec=pltpu.PrefetchScalarGridSpec(
                num_scalar_prefetch=0,
                grid=(N_dst_p // TM, N_src_p // TK),
                in_specs=[
                    pl.BlockSpec((TM, TK), lambda i, k: (i, k)),           # adjacency tile (bf16)
                    pl.BlockSpec((TK, F_in_p), lambda i, k: (k, 0)),       # raw features (bf16)
                    pl.BlockSpec((F_in_p, F_out_p), lambda i, k: (0, 0)),  # W (resident, f32)
                ],
                out_specs=pl.BlockSpec((TM, F_out_p), lambda i, k: (i, 0)),
                scratch_shapes=[
                    pltpu.VMEM((TM, F_in_p), jnp.float32),    # A @ X accumulator
                    pltpu.VMEM((TM, 1), jnp.float32),         # in-degree accumulator
                ],
            ),
            compiler_params=agg_compiler_params,
        )(adj_p, feat_p, w_p)

    return out_p[:N_dst, :F_out]


# ----------------------------------------------------------------------------- reference
def _reference(adj, feat, weight):
    """Pure-JAX reference mirroring the PyTorch module exactly (f32)."""
    N = feat.shape[0]
    out_degs = jnp.maximum(jnp.sum(adj, axis=0), 1.0)
    in_degs = jnp.maximum(jnp.sum(adj, axis=1), 1.0)
    norm_src = jnp.power(out_degs, -0.5).reshape(N, 1)
    norm_dst = jnp.power(in_degs, -0.5).reshape(N, 1)
    if feat.shape[1] > weight.shape[1]:
        rst = adj @ ((feat @ weight) * norm_src)
    else:
        rst = (adj @ feat) @ weight
    return rst * norm_dst


if __name__ == "__main__":
    key = jax.random.PRNGKey(0)

    # (N, F_in, F_out, tm, tk): exercise both branches at a tiny size with default
    # tiles, and at a size that actually hits a multi-tile (dst, K) grid, the
    # pl.when init/finalize accumulator path, and non-trivial padding.
    cases = [
        (16, 32, 8, 512, 2048),     # matmul-first, single K tile
        (16, 8, 32, 512, 2048),     # aggregate-first, single K tile
        (380, 160, 96, 128, 128),   # matmul-first, 3x3 grid + padding
        (380, 96, 160, 128, 128),   # aggregate-first, 3x3 grid + padding
    ]

    for (N, F_in, F_out, tm, tk) in cases:
        key, k_adj, k_feat, k_w = jax.random.split(key, 4)

        adj = (jax.random.uniform(k_adj, (N, N)) < 0.3).astype(jnp.float32)
        feat = jax.random.normal(k_feat, (N, F_in), dtype=jnp.float32)

        # Xavier-uniform init for the (in_feats, out_feats) weight, as in reset_parameters().
        bound = math.sqrt(6.0 / (F_in + F_out))
        weight = jax.random.uniform(k_w, (F_in, F_out), minval=-bound, maxval=bound,
                                    dtype=jnp.float32)

        out = graph_conv(adj, feat, weight, tm=tm, tk=tk)
        jax.block_until_ready(out)

        ref = _reference(adj, feat, weight)
        assert out.shape == (N, F_out)
        # bf16-streamed operands (adj is exact; feat/H are bf16-rounded, f32-accumulated)
        # -> slightly looser tolerance than a pure-f32 pipeline.
        assert jnp.allclose(out, ref, atol=1e-2, rtol=5e-2), \
            f"mismatch vs reference (N={N}, F_in={F_in}, F_out={F_out}): " \
            f"max_abs_err={jnp.max(jnp.abs(out - ref))}"

    print("KERNEL_OK")
</pallas_src>

<mosaic_0001>
module attributes {stable_mosaic.version = 11 : i64} {
  func.func @_project_scale_kernel(%arg0: i32, %arg1: memref<128x128xf32, #tpu.memory_space<vmem>>, %arg2: memref<128x128xf32, #tpu.memory_space<vmem>>, %arg3: memref<128x1xf32, #tpu.memory_space<vmem>>, %arg4: memref<128x128xbf16, #tpu.memory_space<vmem>>) attributes {dimension_semantics = [#tpu.dimension_semantics<parallel>], iteration_bounds = array<i64: 1>, scalar_prefetch = 0 : i64, scratch_operands = 0 : i64, tpu.core_type = #tpu.core_type<tc>, window_params = [{transform_indices = @transform_0, window_bounds = array<i64: 128, 128>}, {pipeline_mode = #tpu.pipeline_mode<synchronous>, transform_indices = @transform_1, window_bounds = array<i64: 128, 128>}, {transform_indices = @transform_2, window_bounds = array<i64: 128, 1>}, {transform_indices = @transform_3, window_bounds = array<i64: 128, 128>}]} {
    %c0 = arith.constant 0 : index
    %c0_0 = arith.constant 0 : index
    %0 = vector.load %arg1[%c0, %c0_0] : memref<128x128xf32, #tpu.memory_space<vmem>>, vector<128x128xf32>
    %c0_1 = arith.constant 0 : index
    %c0_2 = arith.constant 0 : index
    %1 = vector.load %arg2[%c0_1, %c0_2] : memref<128x128xf32, #tpu.memory_space<vmem>>, vector<128x128xf32>
    %cst = arith.constant dense<0.000000e+00> : vector<128x128xf32>
    %2 = tpu.matmul %0, %1, %cst {dimension_numbers = #tpu.dot_dimension_numbers<[1], [0], [0], [1], [0, 0, 1, 1], [], []>} : vector<128x128xf32>, vector<128x128xf32>, vector<128x128xf32> -> vector<128x128xf32>
    %c0_3 = arith.constant 0 : index
    %c0_4 = arith.constant 0 : index
    %3 = vector.load %arg3[%c0_3, %c0_4] : memref<128x1xf32, #tpu.memory_space<vmem>>, vector<128x1xf32>
    %4 = vector.broadcast %3 : vector<128x1xf32> to vector<128x128xf32>
    %5 = arith.mulf %2, %4 : vector<128x128xf32>
    %6 = arith.truncf %5 : vector<128x128xf32> to vector<128x128xbf16>
    %c0_5 = arith.constant 0 : index
    %c0_6 = arith.constant 0 : index
    %7 = vector.load %arg4[%c0_5, %c0_6] : memref<128x128xbf16, #tpu.memory_space<vmem>>, vector<128x128xbf16>
    tpu.vector_store %arg4[%c0_5, %c0_6], %6 {strides = array<i32>} : memref<128x128xbf16, #tpu.memory_space<vmem>>, vector<128x128xbf16>,
    return
  }
  func.func @transform_0(%arg0: i32) -> (i32, i32) {
    %c0_i32 = arith.constant 0 : i32
    %c0_i32_0 = arith.constant 0 : i32
    return %arg0, %c0_i32 : i32, i32
  }
  func.func @transform_1(%arg0: i32) -> (i32, i32) {
    %c0_i32 = arith.constant 0 : i32
    %c0_i32_0 = arith.constant 0 : i32
    %c0_i32_1 = arith.constant 0 : i32
    return %c0_i32, %c0_i32_0 : i32, i32
  }
  func.func @transform_2(%arg0: i32) -> (i32, i32) {
    %c0_i32 = arith.constant 0 : i32
    %c0_i32_0 = arith.constant 0 : i32
    return %arg0, %c0_i32 : i32, i32
  }
  func.func @transform_3(%arg0: i32) -> (i32, i32) {
    %c0_i32 = arith.constant 0 : i32
    %c0_i32_0 = arith.constant 0 : i32
    return %arg0, %c0_i32 : i32, i32
  }
}

</mosaic_0001>

<llo_original>
// kernel: tpu_custom_call.1
$region0: #{tpu_custom_call.1}
  #allocation0 [shape = 'u32[]', space=smem, size = 0x4, offset = 0x4, fixed_abs, tag = 'smem constant byte address 0x4 - core index']
  #allocation1 [shape = 'u32[144,128]{1,0:T(1,128)}', space=vmem, size = 0x12000, scoped, tag = 'internal scratch']
  %s0 = inlined_call_operand.vmem [shape: f32[128,128], index: 0, kind: input, shape index: {}]
  %s1 = inlined_call_operand.hbm [shape: f32[128,128], index: 1, kind: input, shape index: {}]
  %s2 = inlined_call_operand.vmem [shape: f32[128,1], index: 2, kind: input, shape index: {}]
  %s3 = inlined_call_operand.hbm [shape: bf16[128,128], index: 3, kind: output, shape index: {}]
  %s4 = sld [smem:[#allocation0]]
  $region26: #{tpu_custom_call.1} parent=0
    _
  %s6 = ssub.s32 1, %s4
  %s7 = scalar_select 0, %s6, %s4
  $region1: #{tpu_custom_call.1} parent=0
    #allocation2 [shape = 'u8[65536]{0}', space=vmem, size = 0x10000, scoped, tag = 'input window, operand 1, single buffered']
    #allocation3 [shape = 's32[1]{0}', space=sflag, size = 0x4, scoped, tag = 'scoped memory for tpu_custom_call.1']
    #allocation4 [shape = 's32[1]{0}', space=sflag, size = 0x4, scoped, tag = 'scoped memory for tpu_custom_call.1']
    #allocation5 [shape = 'u8[32768]{0}', space=vmem, size = 0x8000, scoped, tag = 'output window, operand 0, single buffered']
    %8 = vsyncpa [#allocation3], 0
    %9 = vsyncpa [#allocation4], 0
    // Predicated region
    $region2: #{tpu_custom_call.1} parent=1 // pred_check
      _
    $region3: #{tpu_custom_call.1} parent=1 // pred_check_branch
      %11 = sbr.rel (0) target = $region5
    $region4: #{tpu_custom_call.1} parent=1 // pred_region
      _
    $region5: #{tpu_custom_call.1} parent=1 // pred_fallthru
      _
    // Predicated region
    $region6: #{tpu_custom_call.1} parent=1 // pred_check
      _
    $region7: #{tpu_custom_call.1} parent=1 // pred_check_branch
      %13 = sbr.rel (0) target = $region9
    $region8: #{tpu_custom_call.1} parent=1 // pred_region
      %s15 = ssub.s32 2048, 2048
      %16 = vsyncadd [#allocation3], %s15
      %s17 = sshll.u32 [#allocation2], 4
      %s18 = int_to_ptr.vmem [resolvable:$true] %s17
      %23 = dma.hbm_to_vmem [thread:$0]  %s1, 2048, %s18, [#allocation3], 128, 128, 8
    $region9: #{tpu_custom_call.1} parent=1 // pred_fallthru
      _
    // Predicated region
    $region10: #{tpu_custom_call.1} parent=1 // pred_check
      _
    $region11: #{tpu_custom_call.1} parent=1 // pred_check_branch
      %25 = sbr.rel (0) target = $region13
    $region12: #{tpu_custom_call.1} parent=1 // pred_region
      _
    $region13: #{tpu_custom_call.1} parent=1 // pred_fallthru
      _
    // Predicated region
    $region14: #{tpu_custom_call.1} parent=1 // pred_check
      _
    $region15: #{tpu_custom_call.1} parent=1 // pred_check_branch
      %27 = sbr.rel (0) target = $region17
    $region16: #{tpu_custom_call.1} parent=1 // pred_region
      %28 = dma.done [#allocation3], 2048
    $region17: #{tpu_custom_call.1} parent=1 // pred_fallthru
      _
    %v29 = vld [vmem:[%s0] sm:$0xff]
    %v30 = vld [vmem:[%s0 + $0x8] sm:$0xff]
    %v31 = vld [vmem:[%s0 + $0x10] sm:$0xff]
    %v32 = vld [vmem:[%s0 + $0x18] sm:$0xff]
    %v33 = vld [vmem:[%s0 + $0x20] sm:$0xff]
    %v34 = vld [vmem:[%s0 + $0x28] sm:$0xff]
    %v35 = vld [vmem:[%s0 + $0x30] sm:$0xff]
    %v36 = vld [vmem:[%s0 + $0x38] sm:$0xff]
    %v37 = vld [vmem:[%s0 + $0x40] sm:$0xff]
    %v38 = vld [vmem:[%s0 + $0x48] sm:$0xff]
    %v39 = vld [vmem:[%s0 + $0x50] sm:$0xff]
    %v40 = vld [vmem:[%s0 + $0x58] sm:$0xff]
    %v41 = vld [vmem:[%s0 + $0x60] sm:$0xff]
    %v42 = vld [vmem:[%s0 + $0x68] sm:$0xff]
    %v43 = vld [vmem:[%s0 + $0x70] sm:$0xff]
    %v44 = vld [vmem:[%s0 + $0x78] sm:$0xff]
    %v45 = vld [vmem:[#allocation2] sm:$0xff]
    %v46 = vld [vmem:[#allocation2 + $0x8] sm:$0xff]
    %v47 = vld [vmem:[#allocation2 + $0x10] sm:$0xff]
    %v48 = vld [vmem:[#allocation2 + $0x18] sm:$0xff]
    %v49 = vld [vmem:[#allocation2 + $0x20] sm:$0xff]
    %v50 = vld [vmem:[#allocation2 + $0x28] sm:$0xff]
    %v51 = vld [vmem:[#allocation2 + $0x30] sm:$0xff]
    %v52 = vld [vmem:[#allocation2 + $0x38] sm:$0xff]
    %v53 = vld [vmem:[#allocation2 + $0x40] sm:$0xff]
    %v54 = vld [vmem:[#allocation2 + $0x48] sm:$0xff]
    %v55 = vld [vmem:[#allocation2 + $0x50] sm:$0xff]
    %v56 = vld [vmem:[#allocation2 + $0x58] sm:$0xff]
    %v57 = vld [vmem:[#allocation2 + $0x60] sm:$0xff]
    %v58 = vld [vmem:[#allocation2 + $0x68] sm:$0xff]
    %v59 = vld [vmem:[#allocation2 + $0x70] sm:$0xff]
    %v60 = vld [vmem:[#allocation2 + $0x78] sm:$0xff]
    %61 = vmatprep.subr.mxu0 0.0
    %62 = vmatpush1.msra.mxu0 %v45
    %63 = vmatprep.subr.mxu0 0.0
    %64 = vmatpush1.msra.mxu0 %v46
    %65 = vmatprep.subr.mxu0 0.0
    %66 = vmatpush1.msra.mxu0 %v47
    %67 = vmatprep.subr.mxu0 0.0
    %68 = vmatpush1.msra.mxu0 %v48
    %69 = vmatprep.subr.mxu0 0.0
    %70 = vmatpush1.msra.mxu0 %v49
    %71 = vmatprep.subr.mxu0 0.0
    %72 = vmatpush1.msra.mxu0 %v50
    %73 = vmatprep.subr.mxu0 0.0
    %74 = vmatpush1.msra.mxu0 %v51
    %75 = vmatprep.subr.mxu0 0.0
    %76 = vmatpush1.msra.mxu0 %v52
    %77 = vmatprep.subr.mxu0 0.0
    %78 = vmatpush1.msra.mxu0 %v53
    %79 = vmatprep.subr.mxu0 0.0
    %80 = vmatpush1.msra.mxu0 %v54
    %81 = vmatprep.subr.mxu0 0.0
    %82 = vmatpush1.msra.mxu0 %v55
    %83 = vmatprep.subr.mxu0 0.0
    %84 = vmatpush1.msra.mxu0 %v56
    %85 = vmatprep.subr.mxu0 0.0
    %86 = vmatpush1.msra.mxu0 %v57
    %87 = vmatprep.subr.mxu0 0.0
    %88 = vmatpush1.msra.mxu0 %v58
    %89 = vmatprep.subr.mxu0 0.0
    %90 = vmatpush1.msra.mxu0 %v59
    %91 = vmatprep.subr.mxu0 0.0
    %92 = vmatpush1.msra.mxu0 %v60
    %93 = vmatprep.subr.mxu0 0.0
    %94 = vmatpush1.msra.mxu0 0.0
    %95 = vmatprep.subr.mxu0 0.0
    %96 = vmatpush1.msra.mxu0 0.0
    %97 = vmatprep.subr.mxu0 0.0
    %98 = vmatpush1.msra.mxu0 0.0
    %99 = vmatprep.subr.mxu0 0.0
    %100 = vmatpush1.msra.mxu0 0.0
    %101 = vmatprep.subr.mxu0 0.0
    %102 = vmatpush1.msra.mxu0 0.0
    %103 = vmatprep.subr.mxu0 0.0
    %104 = vmatpush1.msra.mxu0 0.0
    %105 = vmatprep.subr.mxu0 0.0
    %106 = vmatpush1.msra.mxu0 0.0
    %107 = vmatprep.subr.mxu0 0.0
    %108 = vmatpush1.msra.mxu0 0.0
    %109 = vmatprep.subr.mxu0 0.0
    %110 = vmatpush1.msra.mxu0 0.0
    %111 = vmatprep.subr.mxu0 0.0
    %112 = vmatpush1.msra.mxu0 0.0
    %113 = vmatprep.subr.mxu0 0.0
    %114 = vmatpush1.msra.mxu0 0.0
    %115 = vmatprep.subr.mxu0 0.0
    %116 = vmatpush1.msra.mxu0 0.0
    %117 = vmatprep.subr.mxu0 0.0
    %118 = vmatpush1.msra.mxu0 0.0
    %119 = vmatprep.subr.mxu0 0.0
    %120 = vmatpush1.msra.mxu0 0.0
    %121 = vmatprep.subr.mxu0 0.0
    %122 = vmatpush1.msra.mxu0 0.0
    %123 = vmatprep.subr.mxu0 0.0
    %124 = vmatpush1.msra.mxu0 0.0
    %125 = vmatprep.mubr.f32.mxu0 0.0
    %126 = vmatmul.mubr.f32.gmra.mrb[0].mxu0 %v29
    %v127 = vpop.f32.mrb[0].mxu0
    %v128 = vadd.f32 0.0, %v127
    %v129 = vpop.f32.mrb[0].mxu0
    %130 = vmatprep.mubr.f32.mxu0 0.0
    %131 = vmatmul.mubr.f32.gmra.mrb[0].mxu0 %v30
    %v132 = vpop.f32.mrb[0].mxu0
    %v133 = vadd.f32 0.0, %v132
    %v134 = vpop.f32.mrb[0].mxu0
    %135 = vmatprep.mubr.f32.mxu0 0.0
    %136 = vmatmul.mubr.f32.gmra.mrb[0].mxu0 %v31
    %v137 = vpop.f32.mrb[0].mxu0
    %v138 = vadd.f32 0.0, %v137
    %v139 = vpop.f32.mrb[0].mxu0
    %140 = vmatprep.mubr.f32.mxu0 0.0
    %141 = vmatmul.mubr.f32.gmra.mrb[0].mxu0 %v32
    %v142 = vpop.f32.mrb[0].mxu0
    %v143 = vadd.f32 0.0, %v142
    %v144 = vpop.f32.mrb[0].mxu0
    %145 = vmatprep.mubr.f32.mxu0 0.0
    %146 = vmatmul.mubr.f32.gmra.mrb[0].mxu0 %v33
    %v147 = vpop.f32.mrb[0].mxu0
    %v148 = vadd.f32 0.0, %v147
    %v149 = vpop.f32.mrb[0].mxu0
    %150 = vmatprep.mubr.f32.mxu0 0.0
    %151 = vmatmul.mubr.f32.gmra.mrb[0].mxu0 %v34
    %v152 = vpop.f32.mrb[0].mxu0
    %v153 = vadd.f32 0.0, %v152
    %v154 = vpop.f32.mrb[0].mxu0
    %155 = vmatprep.mubr.f32.mxu0 0.0
    %156 = vmatmul.mubr.f32.gmra.mrb[0].mxu0 %v35
    %v157 = vpop.f32.mrb[0].mxu0
    %v158 = vadd.f32 0.0, %v157
    %v159 = vpop.f32.mrb[0].mxu0
    %160 = vmatprep.mubr.f32.mxu0 0.0
    %161 = vmatmul.mubr.f32.gmra.mrb[0].mxu0 %v36
    %v162 = vpop.f32.mrb[0].mxu0
    %v163 = vadd.f32 0.0, %v162
    %v164 = vpop.f32.mrb[0].mxu0
    %165 = vmatprep.mubr.f32.mxu0 0.0
    %166 = vmatmul.mubr.f32.gmra.mrb[0].mxu0 %v37
    %v167 = vpop.f32.mrb[0].mxu0
    %v168 = vadd.f32 0.0, %v167
    %v169 = vpop.f32.mrb[0].mxu0
    %170 = vmatprep.mubr.f32.mxu0 0.0
    %171 = vmatmul.mubr.f32.gmra.mrb[0].mxu0 %v38
    %v172 = vpop.f32.mrb[0].mxu0
    %v173 = vadd.f32 0.0, %v172
    %v174 = vpop.f32.mrb[0].mxu0
    %175 = vmatprep.mubr.f32.mxu0 0.0
    %176 = vmatmul.mubr.f32.gmra.mrb[0].mxu0 %v39
    %v177 = vpop.f32.mrb[0].mxu0
    %v178 = vadd.f32 0.0, %v177
    %v179 = vpop.f32.mrb[0].mxu0
    %180 = vmatprep.mubr.f32.mxu0 0.0
    %181 = vmatmul.mubr.f32.gmra.mrb[0].mxu0 %v40
    %v182 = vpop.f32.mrb[0].mxu0
    %v183 = vadd.f32 0.0, %v182
    %v184 = vpop.f32.mrb[0].mxu0
    %185 = vmatprep.mubr.f32.mxu0 0.0
    %186 = vmatmul.mubr.f32.gmra.mrb[0].mxu0 %v41
    %v187 = vpop.f32.mrb[0].mxu0
    %v188 = vadd.f32 0.0, %v187
    %v189 = vpop.f32.mrb[0].mxu0
    %190 = vmatprep.mubr.f32.mxu0 0.0
    %191 = vmatmul.mubr.f32.gmra.mrb[0].mxu0 %v42
    %v192 = vpop.f32.mrb[0].mxu0
    %v193 = vadd.f32 0.0, %v192
    %v194 = vpop.f32.mrb[0].mxu0
    %195 = vmatprep.mubr.f32.mxu0 0.0
    %196 = vmatmul.mubr.f32.gmra.mrb[0].mxu0 %v43
    %v197 = vpop.f32.mrb[0].mxu0
    %v198 = vadd.f32 0.0, %v197
    %v199 = vpop.f32.mrb[0].mxu0
    %200 = vmatprep.mubr.f32.mxu0 0.0
    %201 = vmatmul.mubr.f32.gmra.mrb[0].mxu0 %v44
    %v202 = vpop.f32.mrb[0].mxu0
    %v203 = vadd.f32 0.0, %v202
    %v204 = vpop.f32.mrb[0].mxu0
    %205 = vdwg.mxu0
    %v206 = vld [vmem:[%s2] sm:$0xff]
    %v207 = vld [vmem:[%s2 + $0x8] sm:$0xff]
    %v208 = vld [vmem:[%s2 + $0x10] sm:$0xff]
    %v209 = vld [vmem:[%s2 + $0x18] sm:$0xff]
    %v210 = vld [vmem:[%s2 + $0x20] sm:$0xff]
    %v211 = vld [vmem:[%s2 + $0x28] sm:$0xff]
    %v212 = vld [vmem:[%s2 + $0x30] sm:$0xff]
    %v213 = vld [vmem:[%s2 + $0x38] sm:$0xff]
    %v214 = vld [vmem:[%s2 + $0x40] sm:$0xff]
    %v215 = vld [vmem:[%s2 + $0x48] sm:$0xff]
    %v216 = vld [vmem:[%s2 + $0x50] sm:$0xff]
    %v217 = vld [vmem:[%s2 + $0x58] sm:$0xff]
    %v218 = vld [vmem:[%s2 + $0x60] sm:$0xff]
    %v219 = vld [vmem:[%s2 + $0x68] sm:$0xff]
    %v220 = vld [vmem:[%s2 + $0x70] sm:$0xff]
    %v221 = vld [vmem:[%s2 + $0x78] sm:$0xff]
    %223 = vset.pattern.permute.xlu0 0
    %224 = vperm.xlu0 %223, %v206
    %v225 = vpop.permute.xlu0 %224
    %228 = vset.pattern.permute.xlu0 0
    %229 = vperm.xlu0 %228, %v207
    %v230 = vpop.permute.xlu0 %229
    %233 = vset.pattern.permute.xlu0 0
    %234 = vperm.xlu0 %233, %v208
    %v235 = vpop.permute.xlu0 %234
    %238 = vset.pattern.permute.xlu0 0
    %239 = vperm.xlu0 %238, %v209
    %v240 = vpop.permute.xlu0 %239
    %243 = vset.pattern.permute.xlu0 0
    %244 = vperm.xlu0 %243, %v210
    %v245 = vpop.permute.xlu0 %244
    %248 = vset.pattern.permute.xlu0 0
    %249 = vperm.xlu0 %248, %v211
    %v250 = vpop.permute.xlu0 %249
    %253 = vset.pattern.permute.xlu0 0
    %254 = vperm.xlu0 %253, %v212
    %v255 = vpop.permute.xlu0 %254
    %258 = vset.pattern.permute.xlu0 0
    %259 = vperm.xlu0 %258, %v213
    %v260 = vpop.permute.xlu0 %259
    %263 = vset.pattern.permute.xlu0 0
    %264 = vperm.xlu0 %263, %v214
    %v265 = vpop.permute.xlu0 %264
    %268 = vset.pattern.permute.xlu0 0
    %269 = vperm.xlu0 %268, %v215
    %v270 = vpop.permute.xlu0 %269
    %273 = vset.pattern.permute.xlu0 0
    %274 = vperm.xlu0 %273, %v216
    %v275 = vpop.permute.xlu0 %274
    %278 = vset.pattern.permute.xlu0 0
    %279 = vperm.xlu0 %278, %v217
    %v280 = vpop.permute.xlu0 %279
    %283 = vset.pattern.permute.xlu0 0
    %284 = vperm.xlu0 %283, %v218
    %v285 = vpop.permute.xlu0 %284
    %288 = vset.pattern.permute.xlu0 0
    %289 = vperm.xlu0 %288, %v219
    %v290 = vpop.permute.xlu0 %289
    %293 = vset.pattern.permute.xlu0 0
    %294 = vperm.xlu0 %293, %v220
    %v295 = vpop.permute.xlu0 %294
    %298 = vset.pattern.permute.xlu0 0
    %299 = vperm.xlu0 %298, %v221
    %v300 = vpop.permute.xlu0 %299
    %v302 = vmul.f32 %v128, %v225
    %v303 = vmul.f32 %v133, %v230
    %v304 = vmul.f32 %v138, %v235
    %v305 = vmul.f32 %v143, %v240
    %v306 = vmul.f32 %v148, %v245
    %v307 = vmul.f32 %v153, %v250
    %v308 = vmul.f32 %v158, %v255
    %v309 = vmul.f32 %v163, %v260
    %v310 = vmul.f32 %v168, %v265
    %v311 = vmul.f32 %v173, %v270
    %v312 = vmul.f32 %v178, %v275
    %v313 = vmul.f32 %v183, %v280
    %v314 = vmul.f32 %v188, %v285
    %v315 = vmul.f32 %v193, %v290
    %v316 = vmul.f32 %v198, %v295
    %v317 = vmul.f32 %v203, %v300
    %v318 = vpack.c.bf16 %v303, %v302
    %v319 = vpack.c.bf16 %v305, %v304
    %v320 = vpack.c.bf16 %v307, %v306
    %v321 = vpack.c.bf16 %v309, %v308
    %v322 = vpack.c.bf16 %v311, %v310
    %v323 = vpack.c.bf16 %v313, %v312
    %v324 = vpack.c.bf16 %v315, %v314
    %v325 = vpack.c.bf16 %v317, %v316
    %v334 = vunpack.c.l.b16 %v318
    %v335 = vunpack.c.h.b16 %v318
    %v336 = vunpack.c.l.b16 %v319
    %v337 = vunpack.c.h.b16 %v319
    %v338 = vunpack.c.l.b16 %v320
    %v339 = vunpack.c.h.b16 %v320
    %v340 = vunpack.c.l.b16 %v321
    %v341 = vunpack.c.h.b16 %v321
    %v342 = vunpack.c.l.b16 %v322
    %v343 = vunpack.c.h.b16 %v322
    %v344 = vunpack.c.l.b16 %v323
    %v345 = vunpack.c.h.b16 %v323
    %v346 = vunpack.c.l.b16 %v324
    %v347 = vunpack.c.h.b16 %v324
    %v348 = vunpack.c.l.b16 %v325
    %v349 = vunpack.c.h.b16 %v325
    %v350 = vpack.c.b16 %v334, %v334
    %v351 = vpack.c.b16 %v335, %v335
    %v352 = vpack.c.b16 %v336, %v336
    %v353 = vpack.c.b16 %v337, %v337
    %v354 = vpack.c.b16 %v338, %v338
    %v355 = vpack.c.b16 %v339, %v339
    %v356 = vpack.c.b16 %v340, %v340
    %v357 = vpack.c.b16 %v341, %v341
    %v358 = vpack.c.b16 %v342, %v342
    %v359 = vpack.c.b16 %v343, %v343
    %v360 = vpack.c.b16 %v344, %v344
    %v361 = vpack.c.b16 %v345, %v345
    %v362 = vpack.c.b16 %v346, %v346
    %v363 = vpack.c.b16 %v347, %v347
    %v364 = vpack.c.b16 %v348, %v348
    %v365 = vpack.c.b16 %v349, %v349
    %382 = vst [vmem:[#allocation5] sm:$0xf] %v350
    %383 = vst [vmem:[#allocation5 + $0x4] sm:$0xf] %v351
    %384 = vst [vmem:[#allocation5 + $0x8] sm:$0xf] %v352
    %385 = vst [vmem:[#allocation5 + $0xc] sm:$0xf] %v353
    %386 = vst [vmem:[#allocation5 + $0x10] sm:$0xf] %v354
    %387 = vst [vmem:[#allocation5 + $0x14] sm:$0xf] %v355
    %388 = vst [vmem:[#allocation5 + $0x18] sm:$0xf] %v356
    %389 = vst [vmem:[#allocation5 + $0x1c] sm:$0xf] %v357
    %390 = vst [vmem:[#allocation5 + $0x20] sm:$0xf] %v358
    %391 = vst [vmem:[#allocation5 + $0x24] sm:$0xf] %v359
    %392 = vst [vmem:[#allocation5 + $0x28] sm:$0xf] %v360
    %393 = vst [vmem:[#allocation5 + $0x2c] sm:$0xf] %v361
    %394 = vst [vmem:[#allocation5 + $0x30] sm:$0xf] %v362
    %395 = vst [vmem:[#allocation5 + $0x34] sm:$0xf] %v363
    %396 = vst [vmem:[#allocation5 + $0x38] sm:$0xf] %v364
    %397 = vst [vmem:[#allocation5 + $0x3c] sm:$0xf] %v365
    // Predicated region
    $region18: #{tpu_custom_call.1} parent=1 // pred_check
      _
    $region19: #{tpu_custom_call.1} parent=1 // pred_check_branch
      %399 = sbr.rel (0) target = $region21
    $region20: #{tpu_custom_call.1} parent=1 // pred_region
      %s401 = ssub.s32 1024, 1024
      %402 = vsyncadd [#allocation4], %s401
      %s403 = sshll.u32 [#allocation5], 4
      %s404 = int_to_ptr.vmem [resolvable:$true] %s403
      %409 = dma.vmem_to_hbm [thread:$0]  %s404, 1024, %s3, [#allocation4], 64, 64, 4
    $region21: #{tpu_custom_call.1} parent=1 // pred_fallthru
      _
    // Predicated region
    $region22: #{tpu_custom_call.1} parent=1 // pred_check
      _
    $region23: #{tpu_custom_call.1} parent=1 // pred_check_branch
      %411 = sbr.rel (0) target = $region25
    $region24: #{tpu_custom_call.1} parent=1 // pred_region
      %412 = dma.done [#allocation4], 1024
    $region25: #{tpu_custom_call.1} parent=1 // pred_fallthru
      _
    %413 = vsyncpa [#allocation3], 1
    %414 = vsyncpa [#allocation4], 1

</llo_original>
